<compile_context>
chip_gen: v5e
topology: v5e:2x2
jax: 0.10.0
libtpu: 0.0.40
codegen_flags: <defaults>
</compile_context>

<pallas_src>
import jax
import jax.numpy as jnp
from jax import lax
from jax.experimental import pallas as pl
from jax.experimental.pallas import tpu as pltpu


def rnn_ae_kernel(xc_ref,      # [T, BB, H]  x_t*W_ih1 + b_ih1 + b_hh1, lane-dense
                  whh1T_ref,   # [H, H]      W_hh1^T
                  whh2T_ref,   # [H, H]      W_hh2^T
                  c2_ref,      # [1, H]      W_ih2*1 + b_ih2 + b_hh2 (decoder input is ones)
                  fcw_ref,     # [1, H]      fc weight
                  fcb_ref,     # [1, 1]      fc bias
                  out_ref,     # [T, BB]     sigmoid(fc(decoder hidden)), time-major
                  hs_ref):     # scratch [T, BB, H]  decoder hidden states
    T, BB, H = xc_ref.shape

    # Full unroll only for short sequences; partial unroll keeps LLO visibility
    # without exploding code size / live ranges for long T.
    unroll = True if T <= 32 else 8

    # Hold an [H,H] weight in vregs only while its phase runs, and only if it
    # fits comfortably (H=128 f32 -> 16 vregs). For H > 128, stream from VMEM.
    hold_in_vregs = H <= 128

    # ---- encoder RNN: h_t = tanh(xc[t] + h_{t-1} @ W_hh1^T) ----
    whh1T = whh1T_ref[...] if hold_in_vregs else None

    def enc_body(t, h):
        w = whh1T if hold_in_vregs else whh1T_ref[...]
        # DEFAULT MXU precision matches the pure-JAX reference on the same
        # chip; pin precision=lax.Precision.HIGHEST if bit-parity against a
        # CPU/f32 reference is required (costs extra MXU passes).
        pre = xc_ref[t] + jnp.dot(h, w, preferred_element_type=jnp.float32)
        return jnp.tanh(pre)

    h = lax.fori_loop(0, T, enc_body,
                      jnp.zeros((BB, H), jnp.float32), unroll=unroll)

    # ---- decoder RNN (input = ones, initial hidden = encoder final hidden) ----
    # Decoder weight/bias loaded here, NOT before the encoder, so they don't
    # occupy vregs through the encoder phase.
    c2 = c2_ref[...]
    whh2T = whh2T_ref[...] if hold_in_vregs else None

    def dec_body(t, h):
        w = whh2T if hold_in_vregs else whh2T_ref[...]
        h = jnp.tanh(c2 + jnp.dot(h, w, preferred_element_type=jnp.float32))
        hs_ref[t] = h          # store is off the h->h dependency chain
        return h

    lax.fori_loop(0, T, dec_body, h, unroll=unroll)

    # ---- deferred fc (H -> 1) + sigmoid + single output write ----
    hs = hs_ref[...]                                                   # [T, BB, H]
    logits = jnp.sum(hs * fcw_ref[...][None, :, :], axis=-1) + fcb_ref[...]
    out_ref[...] = jax.nn.sigmoid(logits)                              # [T, BB]


def rnn_autoencoder_forward(x, params, *, batch_block=256):
    """x: [B, T, 1] float32 (batch-first, like the PyTorch module). Returns [B, T, 1]."""
    B, T, _ = x.shape
    H = params["w_hh1"].shape[0]

    # Pad batch to 8 sublanes; if it exceeds one batch block, round up to a
    # multiple of the block so batch can ride a parallel grid axis (fills the
    # MXU M dim and shards across v7x's two TensorCores).
    Bp = max(8, -(-B // 8) * 8)
    if Bp > batch_block:
        Bp = -(-Bp // batch_block) * batch_block
        BB = batch_block
    else:
        BB = Bp
    n_blocks = Bp // BB

    x_tm = jnp.transpose(x.astype(jnp.float32), (1, 0, 2))             # [T, B, 1]
    x_tm = jnp.pad(x_tm, ((0, 0), (0, Bp - B), (0, 0)))                # [T, Bp, 1]

    wih1 = params["w_ih1"].reshape(1, H)                               # [1, H]
    b1 = (params["b_ih1"] + params["b_hh1"]).reshape(1, H)             # [1, H]
    # Lane-dense encoder input contribution, computed off the serial chain.
    xc = x_tm * wih1[None, :, :] + b1[None, :, :]                      # [T, Bp, H]

    whh1T = params["w_hh1"].T                                          # [H, H]
    whh2T = params["w_hh2"].T                                          # [H, H]
    c2 = (params["w_ih2"].reshape(H)
          + params["b_ih2"] + params["b_hh2"]).reshape(1, H)           # [1, H]
    fcw = params["fc_w"].reshape(1, H)                                 # [1, H]
    fcb = params["fc_b"].reshape(1, 1)                                 # [1, 1]

    # Explicit scoped-VMEM budget: xc block + hs scratch + weights + small
    # vectors, x2 for pipelining/double-buffering + headroom, clamped to
    # [16 MiB, 48 MiB] so it's safe on v5e (16 MiB default) and v7x (64 MiB
    # physical) alike.
    vmem_bytes = 4 * (2 * T * BB * H + 2 * H * H + T * BB + 4 * H + 2)
    vmem_limit = int(min(max(2 * vmem_bytes + (2 << 20), 16 << 20), 48 << 20))

    out_tb = pl.pallas_call(
        rnn_ae_kernel,
        out_shape=jax.ShapeDtypeStruct((T, Bp), jnp.float32),
        grid_spec=pltpu.PrefetchScalarGridSpec(
            num_scalar_prefetch=0,
            grid=(n_blocks,),
            in_specs=[
                pl.BlockSpec((T, BB, H), lambda b: (0, b, 0)),   # xc (batch-blocked)
                pl.BlockSpec((H, H), lambda b: (0, 0)),          # W_hh1^T
                pl.BlockSpec((H, H), lambda b: (0, 0)),          # W_hh2^T
                pl.BlockSpec((1, H), lambda b: (0, 0)),          # c2
                pl.BlockSpec((1, H), lambda b: (0, 0)),          # fc weight
                pl.BlockSpec((1, 1), lambda b: (0, 0)),          # fc bias
            ],
            out_specs=pl.BlockSpec((T, BB), lambda b: (0, b)),
            scratch_shapes=[pltpu.VMEM((T, BB, H), jnp.float32)],  # decoder hiddens
        ),
        compiler_params=pltpu.CompilerParams(
            dimension_semantics=("parallel",),
            vmem_limit_bytes=vmem_limit),
    )(xc, whh1T, whh2T, c2, fcw, fcb)

    # [T, Bp] -> drop padded columns -> [B, T, 1]
    return jnp.transpose(out_tb[:, :B], (1, 0))[:, :, None]


def reference_forward(x, params):
    """Pure-JAX replica of the PyTorch forward (for verification)."""
    B, T, _ = x.shape
    H = params["w_hh1"].shape[0]
    h = jnp.zeros((B, H), jnp.float32)
    for t in range(T):
        xt = x[:, t, :]                                                # [B, 1]
        h = jnp.tanh(xt @ params["w_ih1"].T + params["b_ih1"]
                     + h @ params["w_hh1"].T + params["b_hh1"])
    ones_t = jnp.ones((B, 1), jnp.float32)
    outs = []
    for t in range(T):
        h = jnp.tanh(ones_t @ params["w_ih2"].T + params["b_ih2"]
                     + h @ params["w_hh2"].T + params["b_hh2"])
        outs.append(jax.nn.sigmoid(h @ params["fc_w"].T + params["fc_b"]))
    return jnp.stack(outs, axis=1)                                     # [B, T, 1]


def init_params(key, hidden_size):
    """Deterministic init mirroring the PyTorch module's parameter shapes."""
    H = hidden_size
    k = 1.0 / jnp.sqrt(jnp.float32(H))
    keys = jax.random.split(key, 10)
    u = lambda kk, shape: jax.random.uniform(kk, shape, jnp.float32, -k, k)
    return {
        "w_ih1": u(keys[0], (H, 1)), "w_hh1": u(keys[1], (H, H)),
        "b_ih1": u(keys[2], (H,)),   "b_hh1": u(keys[3], (H,)),
        "w_ih2": u(keys[4], (H, 1)), "w_hh2": u(keys[5], (H, H)),
        "b_ih2": u(keys[6], (H,)),   "b_hh2": u(keys[7], (H,)),
        "fc_w": u(keys[8], (1, H)),  "fc_b": u(keys[9], (1,)),
    }


if __name__ == "__main__":
    B, T, H = 4, 8, 128   # small shapes; H=128 keeps the recurrence lane-aligned

    key = jax.random.PRNGKey(0)
    k_param, k_x = jax.random.split(key)
    params = init_params(k_param, H)
    x = jax.random.normal(k_x, (B, T, 1), jnp.float32)

    out = rnn_autoencoder_forward(x, params)
    out = jax.block_until_ready(out)

    ref = reference_forward(x, params)
    assert out.shape == (B, T, 1)
    assert jnp.allclose(out, ref, atol=1e-5, rtol=1e-5), (
        f"max abs err {jnp.max(jnp.abs(out - ref))}")

    print("KERNEL_OK")
</pallas_src>

<mosaic_0001>
module attributes {stable_mosaic.version = 11 : i64} {
  func.func @rnn_ae_kernel(%arg0: i32, %arg1: memref<8x8x128xf32, #tpu.memory_space<vmem>>, %arg2: memref<128x128xf32, #tpu.memory_space<vmem>>, %arg3: memref<128x128xf32, #tpu.memory_space<vmem>>, %arg4: memref<1x128xf32, #tpu.memory_space<vmem>>, %arg5: memref<1x128xf32, #tpu.memory_space<vmem>>, %arg6: memref<1x1xf32, #tpu.memory_space<vmem>>, %arg7: memref<8x8xf32, #tpu.memory_space<vmem>>, %arg8: memref<8x8x128xf32, #tpu.memory_space<vmem>>) attributes {dimension_semantics = [#tpu.dimension_semantics<parallel>], iteration_bounds = array<i64: 1>, scalar_prefetch = 0 : i64, scratch_operands = 1 : i64, tpu.core_type = #tpu.core_type<tc>, window_params = [{transform_indices = @transform_0, window_bounds = array<i64: 8, 8, 128>}, {pipeline_mode = #tpu.pipeline_mode<synchronous>, transform_indices = @transform_1, window_bounds = array<i64: 128, 128>}, {pipeline_mode = #tpu.pipeline_mode<synchronous>, transform_indices = @transform_2, window_bounds = array<i64: 128, 128>}, {pipeline_mode = #tpu.pipeline_mode<synchronous>, transform_indices = @transform_3, window_bounds = array<i64: 1, 128>}, {pipeline_mode = #tpu.pipeline_mode<synchronous>, transform_indices = @transform_4, window_bounds = array<i64: 1, 128>}, {pipeline_mode = #tpu.pipeline_mode<synchronous>, transform_indices = @transform_5, window_bounds = array<i64: 1, 1>}, {transform_indices = @transform_6, window_bounds = array<i64: 8, 8>}]} {
    %c0 = arith.constant 0 : index
    %c0_0 = arith.constant 0 : index
    %0 = vector.load %arg2[%c0, %c0_0] : memref<128x128xf32, #tpu.memory_space<vmem>>, vector<128x128xf32>
    %cst = arith.constant 0.000000e+00 : f32
    %1 = vector.broadcast %cst : f32 to vector<8x128xf32>
    %c0_i32 = arith.constant 0 : i32
    %2 = arith.index_cast %c0_i32 : i32 to index
    %c0_1 = arith.constant 0 : index
    %c0_2 = arith.constant 0 : index
    %3 = vector.load %arg1[%2, %c0_1, %c0_2] : memref<8x8x128xf32, #tpu.memory_space<vmem>>, vector<1x8x128xf32>
    %4 = vector.shape_cast %3 : vector<1x8x128xf32> to vector<8x128xf32>
    %cst_3 = arith.constant dense<0.000000e+00> : vector<8x128xf32>
    %5 = tpu.matmul %1, %0, %cst_3 {dimension_numbers = #tpu.dot_dimension_numbers<[1], [0], [0], [1], [0, 0, 1, 1], [], []>} : vector<8x128xf32>, vector<128x128xf32>, vector<8x128xf32> -> vector<8x128xf32>
    %6 = arith.addf %4, %5 : vector<8x128xf32>
    %7 = math.tanh %6 : vector<8x128xf32>
    %c1_i32 = arith.constant 1 : i32
    %8 = arith.index_cast %c1_i32 : i32 to index
    %c0_4 = arith.constant 0 : index
    %c0_5 = arith.constant 0 : index
    %9 = vector.load %arg1[%8, %c0_4, %c0_5] : memref<8x8x128xf32, #tpu.memory_space<vmem>>, vector<1x8x128xf32>
    %10 = vector.shape_cast %9 : vector<1x8x128xf32> to vector<8x128xf32>
    %cst_6 = arith.constant dense<0.000000e+00> : vector<8x128xf32>
    %11 = tpu.matmul %7, %0, %cst_6 {dimension_numbers = #tpu.dot_dimension_numbers<[1], [0], [0], [1], [0, 0, 1, 1], [], []>} : vector<8x128xf32>, vector<128x128xf32>, vector<8x128xf32> -> vector<8x128xf32>
    %12 = arith.addf %10, %11 : vector<8x128xf32>
    %13 = math.tanh %12 : vector<8x128xf32>
    %c2_i32 = arith.constant 2 : i32
    %14 = arith.index_cast %c2_i32 : i32 to index
    %c0_7 = arith.constant 0 : index
    %c0_8 = arith.constant 0 : index
    %15 = vector.load %arg1[%14, %c0_7, %c0_8] : memref<8x8x128xf32, #tpu.memory_space<vmem>>, vector<1x8x128xf32>
    %16 = vector.shape_cast %15 : vector<1x8x128xf32> to vector<8x128xf32>
    %cst_9 = arith.constant dense<0.000000e+00> : vector<8x128xf32>
    %17 = tpu.matmul %13, %0, %cst_9 {dimension_numbers = #tpu.dot_dimension_numbers<[1], [0], [0], [1], [0, 0, 1, 1], [], []>} : vector<8x128xf32>, vector<128x128xf32>, vector<8x128xf32> -> vector<8x128xf32>
    %18 = arith.addf %16, %17 : vector<8x128xf32>
    %19 = math.tanh %18 : vector<8x128xf32>
    %c3_i32 = arith.constant 3 : i32
    %20 = arith.index_cast %c3_i32 : i32 to index
    %c0_10 = arith.constant 0 : index
    %c0_11 = arith.constant 0 : index
    %21 = vector.load %arg1[%20, %c0_10, %c0_11] : memref<8x8x128xf32, #tpu.memory_space<vmem>>, vector<1x8x128xf32>
    %22 = vector.shape_cast %21 : vector<1x8x128xf32> to vector<8x128xf32>
    %cst_12 = arith.constant dense<0.000000e+00> : vector<8x128xf32>
    %23 = tpu.matmul %19, %0, %cst_12 {dimension_numbers = #tpu.dot_dimension_numbers<[1], [0], [0], [1], [0, 0, 1, 1], [], []>} : vector<8x128xf32>, vector<128x128xf32>, vector<8x128xf32> -> vector<8x128xf32>
    %24 = arith.addf %22, %23 : vector<8x128xf32>
    %25 = math.tanh %24 : vector<8x128xf32>
    %c4_i32 = arith.constant 4 : i32
    %26 = arith.index_cast %c4_i32 : i32 to index
    %c0_13 = arith.constant 0 : index
    %c0_14 = arith.constant 0 : index
    %27 = vector.load %arg1[%26, %c0_13, %c0_14] : memref<8x8x128xf32, #tpu.memory_space<vmem>>, vector<1x8x128xf32>
    %28 = vector.shape_cast %27 : vector<1x8x128xf32> to vector<8x128xf32>
    %cst_15 = arith.constant dense<0.000000e+00> : vector<8x128xf32>
    %29 = tpu.matmul %25, %0, %cst_15 {dimension_numbers = #tpu.dot_dimension_numbers<[1], [0], [0], [1], [0, 0, 1, 1], [], []>} : vector<8x128xf32>, vector<128x128xf32>, vector<8x128xf32> -> vector<8x128xf32>
    %30 = arith.addf %28, %29 : vector<8x128xf32>
    %31 = math.tanh %30 : vector<8x128xf32>
    %c5_i32 = arith.constant 5 : i32
    %32 = arith.index_cast %c5_i32 : i32 to index
    %c0_16 = arith.constant 0 : index
    %c0_17 = arith.constant 0 : index
    %33 = vector.load %arg1[%32, %c0_16, %c0_17] : memref<8x8x128xf32, #tpu.memory_space<vmem>>, vector<1x8x128xf32>
    %34 = vector.shape_cast %33 : vector<1x8x128xf32> to vector<8x128xf32>
    %cst_18 = arith.constant dense<0.000000e+00> : vector<8x128xf32>
    %35 = tpu.matmul %31, %0, %cst_18 {dimension_numbers = #tpu.dot_dimension_numbers<[1], [0], [0], [1], [0, 0, 1, 1], [], []>} : vector<8x128xf32>, vector<128x128xf32>, vector<8x128xf32> -> vector<8x128xf32>
    %36 = arith.addf %34, %35 : vector<8x128xf32>
    %37 = math.tanh %36 : vector<8x128xf32>
    %c6_i32 = arith.constant 6 : i32
    %38 = arith.index_cast %c6_i32 : i32 to index
    %c0_19 = arith.constant 0 : index
    %c0_20 = arith.constant 0 : index
    %39 = vector.load %arg1[%38, %c0_19, %c0_20] : memref<8x8x128xf32, #tpu.memory_space<vmem>>, vector<1x8x128xf32>
    %40 = vector.shape_cast %39 : vector<1x8x128xf32> to vector<8x128xf32>
    %cst_21 = arith.constant dense<0.000000e+00> : vector<8x128xf32>
    %41 = tpu.matmul %37, %0, %cst_21 {dimension_numbers = #tpu.dot_dimension_numbers<[1], [0], [0], [1], [0, 0, 1, 1], [], []>} : vector<8x128xf32>, vector<128x128xf32>, vector<8x128xf32> -> vector<8x128xf32>
    %42 = arith.addf %40, %41 : vector<8x128xf32>
    %43 = math.tanh %42 : vector<8x128xf32>
    %c7_i32 = arith.constant 7 : i32
    %44 = arith.index_cast %c7_i32 : i32 to index
    %c0_22 = arith.constant 0 : index
    %c0_23 = arith.constant 0 : index
    %45 = vector.load %arg1[%44, %c0_22, %c0_23] : memref<8x8x128xf32, #tpu.memory_space<vmem>>, vector<1x8x128xf32>
    %46 = vector.shape_cast %45 : vector<1x8x128xf32> to vector<8x128xf32>
    %cst_24 = arith.constant dense<0.000000e+00> : vector<8x128xf32>
    %47 = tpu.matmul %43, %0, %cst_24 {dimension_numbers = #tpu.dot_dimension_numbers<[1], [0], [0], [1], [0, 0, 1, 1], [], []>} : vector<8x128xf32>, vector<128x128xf32>, vector<8x128xf32> -> vector<8x128xf32>
    %48 = arith.addf %46, %47 : vector<8x128xf32>
    %49 = math.tanh %48 : vector<8x128xf32>
    %c8_i32 = arith.constant 8 : i32
    %c0_25 = arith.constant 0 : index
    %c0_26 = arith.constant 0 : index
    %50 = vector.load %arg4[%c0_25, %c0_26] : memref<1x128xf32, #tpu.memory_space<vmem>>, vector<1x128xf32>
    %c0_27 = arith.constant 0 : index
    %c0_28 = arith.constant 0 : index
    %51 = vector.load %arg3[%c0_27, %c0_28] : memref<128x128xf32, #tpu.memory_space<vmem>>, vector<128x128xf32>
    %c0_i32_29 = arith.constant 0 : i32
    %cst_30 = arith.constant dense<0.000000e+00> : vector<8x128xf32>
    %52 = tpu.matmul %49, %51, %cst_30 {dimension_numbers = #tpu.dot_dimension_numbers<[1], [0], [0], [1], [0, 0, 1, 1], [], []>} : vector<8x128xf32>, vector<128x128xf32>, vector<8x128xf32> -> vector<8x128xf32>
    %53 = vector.broadcast %50 : vector<1x128xf32> to vector<8x128xf32>
    %54 = arith.addf %53, %52 : vector<8x128xf32>
    %55 = math.tanh %54 : vector<8x128xf32>
    %56 = arith.index_cast %c0_i32_29 : i32 to index
    %c0_31 = arith.constant 0 : index
    %c0_32 = arith.constant 0 : index
    %57 = vector.load %arg8[%56, %c0_31, %c0_32] : memref<8x8x128xf32, #tpu.memory_space<vmem>>, vector<1x8x128xf32>
    %58 = vector.shape_cast %57 : vector<1x8x128xf32> to vector<8x128xf32>
    %59 = vector.shape_cast %55 : vector<8x128xf32> to vector<1x8x128xf32>
    tpu.vector_store %arg8[%56, %c0_31, %c0_32], %59 {strides = array<i32>} : memref<8x8x128xf32, #tpu.memory_space<vmem>>, vector<1x8x128xf32>,
    %c1_i32_33 = arith.constant 1 : i32
    %cst_34 = arith.constant dense<0.000000e+00> : vector<8x128xf32>
    %60 = tpu.matmul %55, %51, %cst_34 {dimension_numbers = #tpu.dot_dimension_numbers<[1], [0], [0], [1], [0, 0, 1, 1], [], []>} : vector<8x128xf32>, vector<128x128xf32>, vector<8x128xf32> -> vector<8x128xf32>
    %61 = vector.broadcast %50 : vector<1x128xf32> to vector<8x128xf32>
    %62 = arith.addf %61, %60 : vector<8x128xf32>
    %63 = math.tanh %62 : vector<8x128xf32>
    %64 = arith.index_cast %c1_i32_33 : i32 to index
    %c0_35 = arith.constant 0 : index
    %c0_36 = arith.constant 0 : index
    %65 = vector.load %arg8[%64, %c0_35, %c0_36] : memref<8x8x128xf32, #tpu.memory_space<vmem>>, vector<1x8x128xf32>
    %66 = vector.shape_cast %65 : vector<1x8x128xf32> to vector<8x128xf32>
    %67 = vector.shape_cast %63 : vector<8x128xf32> to vector<1x8x128xf32>
    tpu.vector_store %arg8[%64, %c0_35, %c0_36], %67 {strides = array<i32>} : memref<8x8x128xf32, #tpu.memory_space<vmem>>, vector<1x8x128xf32>,
    %c2_i32_37 = arith.constant 2 : i32
    %cst_38 = arith.constant dense<0.000000e+00> : vector<8x128xf32>
    %68 = tpu.matmul %63, %51, %cst_38 {dimension_numbers = #tpu.dot_dimension_numbers<[1], [0], [0], [1], [0, 0, 1, 1], [], []>} : vector<8x128xf32>, vector<128x128xf32>, vector<8x128xf32> -> vector<8x128xf32>
    %69 = vector.broadcast %50 : vector<1x128xf32> to vector<8x128xf32>
    %70 = arith.addf %69, %68 : vector<8x128xf32>
    %71 = math.tanh %70 : vector<8x128xf32>
    %72 = arith.index_cast %c2_i32_37 : i32 to index
    %c0_39 = arith.constant 0 : index
    %c0_40 = arith.constant 0 : index
    %73 = vector.load %arg8[%72, %c0_39, %c0_40] : memref<8x8x128xf32, #tpu.memory_space<vmem>>, vector<1x8x128xf32>
    %74 = vector.shape_cast %73 : vector<1x8x128xf32> to vector<8x128xf32>
    %75 = vector.shape_cast %71 : vector<8x128xf32> to vector<1x8x128xf32>
    tpu.vector_store %arg8[%72, %c0_39, %c0_40], %75 {strides = array<i32>} : memref<8x8x128xf32, #tpu.memory_space<vmem>>, vector<1x8x128xf32>,
    %c3_i32_41 = arith.constant 3 : i32
    %cst_42 = arith.constant dense<0.000000e+00> : vector<8x128xf32>
    %76 = tpu.matmul %71, %51, %cst_42 {dimension_numbers = #tpu.dot_dimension_numbers<[1], [0], [0], [1], [0, 0, 1, 1], [], []>} : vector<8x128xf32>, vector<128x128xf32>, vector<8x128xf32> -> vector<8x128xf32>
    %77 = vector.broadcast %50 : vector<1x128xf32> to vector<8x128xf32>
    %78 = arith.addf %77, %76 : vector<8x128xf32>
    %79 = math.tanh %78 : vector<8x128xf32>
    %80 = arith.index_cast %c3_i32_41 : i32 to index
    %c0_43 = arith.constant 0 : index
    %c0_44 = arith.constant 0 : index
    %81 = vector.load %arg8[%80, %c0_43, %c0_44] : memref<8x8x128xf32, #tpu.memory_space<vmem>>, vector<1x8x128xf32>
    %82 = vector.shape_cast %81 : vector<1x8x128xf32> to vector<8x128xf32>
    %83 = vector.shape_cast %79 : vector<8x128xf32> to vector<1x8x128xf32>
    tpu.vector_store %arg8[%80, %c0_43, %c0_44], %83 {strides = array<i32>} : memref<8x8x128xf32, #tpu.memory_space<vmem>>, vector<1x8x128xf32>,
    %c4_i32_45 = arith.constant 4 : i32
    %cst_46 = arith.constant dense<0.000000e+00> : vector<8x128xf32>
    %84 = tpu.matmul %79, %51, %cst_46 {dimension_numbers = #tpu.dot_dimension_numbers<[1], [0], [0], [1], [0, 0, 1, 1], [], []>} : vector<8x128xf32>, vector<128x128xf32>, vector<8x128xf32> -> vector<8x128xf32>
    %85 = vector.broadcast %50 : vector<1x128xf32> to vector<8x128xf32>
    %86 = arith.addf %85, %84 : vector<8x128xf32>
    %87 = math.tanh %86 : vector<8x128xf32>
    %88 = arith.index_cast %c4_i32_45 : i32 to index
    %c0_47 = arith.constant 0 : index
    %c0_48 = arith.constant 0 : index
    %89 = vector.load %arg8[%88, %c0_47, %c0_48] : memref<8x8x128xf32, #tpu.memory_space<vmem>>, vector<1x8x128xf32>
    %90 = vector.shape_cast %89 : vector<1x8x128xf32> to vector<8x128xf32>
    %91 = vector.shape_cast %87 : vector<8x128xf32> to vector<1x8x128xf32>
    tpu.vector_store %arg8[%88, %c0_47, %c0_48], %91 {strides = array<i32>} : memref<8x8x128xf32, #tpu.memory_space<vmem>>, vector<1x8x128xf32>,
    %c5_i32_49 = arith.constant 5 : i32
    %cst_50 = arith.constant dense<0.000000e+00> : vector<8x128xf32>
    %92 = tpu.matmul %87, %51, %cst_50 {dimension_numbers = #tpu.dot_dimension_numbers<[1], [0], [0], [1], [0, 0, 1, 1], [], []>} : vector<8x128xf32>, vector<128x128xf32>, vector<8x128xf32> -> vector<8x128xf32>
    %93 = vector.broadcast %50 : vector<1x128xf32> to vector<8x128xf32>
    %94 = arith.addf %93, %92 : vector<8x128xf32>
    %95 = math.tanh %94 : vector<8x128xf32>
    %96 = arith.index_cast %c5_i32_49 : i32 to index
    %c0_51 = arith.constant 0 : index
    %c0_52 = arith.constant 0 : index
    %97 = vector.load %arg8[%96, %c0_51, %c0_52] : memref<8x8x128xf32, #tpu.memory_space<vmem>>, vector<1x8x128xf32>
    %98 = vector.shape_cast %97 : vector<1x8x128xf32> to vector<8x128xf32>
    %99 = vector.shape_cast %95 : vector<8x128xf32> to vector<1x8x128xf32>
    tpu.vector_store %arg8[%96, %c0_51, %c0_52], %99 {strides = array<i32>} : memref<8x8x128xf32, #tpu.memory_space<vmem>>, vector<1x8x128xf32>,
    %c6_i32_53 = arith.constant 6 : i32
    %cst_54 = arith.constant dense<0.000000e+00> : vector<8x128xf32>
    %100 = tpu.matmul %95, %51, %cst_54 {dimension_numbers = #tpu.dot_dimension_numbers<[1], [0], [0], [1], [0, 0, 1, 1], [], []>} : vector<8x128xf32>, vector<128x128xf32>, vector<8x128xf32> -> vector<8x128xf32>
    %101 = vector.broadcast %50 : vector<1x128xf32> to vector<8x128xf32>
    %102 = arith.addf %101, %100 : vector<8x128xf32>
    %103 = math.tanh %102 : vector<8x128xf32>
    %104 = arith.index_cast %c6_i32_53 : i32 to index
    %c0_55 = arith.constant 0 : index
    %c0_56 = arith.constant 0 : index
    %105 = vector.load %arg8[%104, %c0_55, %c0_56] : memref<8x8x128xf32, #tpu.memory_space<vmem>>, vector<1x8x128xf32>
    %106 = vector.shape_cast %105 : vector<1x8x128xf32> to vector<8x128xf32>
    %107 = vector.shape_cast %103 : vector<8x128xf32> to vector<1x8x128xf32>
    tpu.vector_store %arg8[%104, %c0_55, %c0_56], %107 {strides = array<i32>} : memref<8x8x128xf32, #tpu.memory_space<vmem>>, vector<1x8x128xf32>,
    %c7_i32_57 = arith.constant 7 : i32
    %cst_58 = arith.constant dense<0.000000e+00> : vector<8x128xf32>
    %108 = tpu.matmul %103, %51, %cst_58 {dimension_numbers = #tpu.dot_dimension_numbers<[1], [0], [0], [1], [0, 0, 1, 1], [], []>} : vector<8x128xf32>, vector<128x128xf32>, vector<8x128xf32> -> vector<8x128xf32>
    %109 = vector.broadcast %50 : vector<1x128xf32> to vector<8x128xf32>
    %110 = arith.addf %109, %108 : vector<8x128xf32>
    %111 = math.tanh %110 : vector<8x128xf32>
    %112 = arith.index_cast %c7_i32_57 : i32 to index
    %c0_59 = arith.constant 0 : index
    %c0_60 = arith.constant 0 : index
    %113 = vector.load %arg8[%112, %c0_59, %c0_60] : memref<8x8x128xf32, #tpu.memory_space<vmem>>, vector<1x8x128xf32>
    %114 = vector.shape_cast %113 : vector<1x8x128xf32> to vector<8x128xf32>
    %115 = vector.shape_cast %111 : vector<8x128xf32> to vector<1x8x128xf32>
    tpu.vector_store %arg8[%112, %c0_59, %c0_60], %115 {strides = array<i32>} : memref<8x8x128xf32, #tpu.memory_space<vmem>>, vector<1x8x128xf32>,
    %c8_i32_61 = arith.constant 8 : i32
    %c0_62 = arith.constant 0 : index
    %c0_63 = arith.constant 0 : index
    %c0_64 = arith.constant 0 : index
    %116 = vector.load %arg8[%c0_62, %c0_63, %c0_64] : memref<8x8x128xf32, #tpu.memory_space<vmem>>, vector<8x8x128xf32>
    %c0_65 = arith.constant 0 : index
    %c0_66 = arith.constant 0 : index
    %117 = vector.load %arg5[%c0_65, %c0_66] : memref<1x128xf32, #tpu.memory_space<vmem>>, vector<1x128xf32>
    %118 = vector.shape_cast %117 : vector<1x128xf32> to vector<1x1x128xf32>
    %119 = vector.broadcast %118 : vector<1x1x128xf32> to vector<8x8x128xf32>
    %120 = arith.mulf %116, %119 : vector<8x8x128xf32>
    %cst_67 = arith.constant dense<0.000000e+00> : vector<8x8xf32>
    %121 = vector.multi_reduction <add>, %120, %cst_67 [2] : vector<8x8x128xf32> to vector<8x8xf32>
    %c0_68 = arith.constant 0 : index
    %c0_69 = arith.constant 0 : index
    %122 = vector.load %arg6[%c0_68, %c0_69] : memref<1x1xf32, #tpu.memory_space<vmem>>, vector<1x1xf32>
    %123 = vector.broadcast %122 : vector<1x1xf32> to vector<8x8xf32>
    %124 = arith.addf %121, %123 : vector<8x8xf32>
    %125 = arith.negf %124 : vector<8x8xf32>
    %126 = math.exp %125 : vector<8x8xf32>
    %cst_70 = arith.constant 1.000000e+00 : f32
    %127 = vector.broadcast %cst_70 : f32 to vector<8x8xf32>
    %128 = arith.addf %127, %126 : vector<8x8xf32>
    %129 = arith.divf %127, %128 : vector<8x8xf32>
    %c0_71 = arith.constant 0 : index
    %c0_72 = arith.constant 0 : index
    %130 = vector.load %arg7[%c0_71, %c0_72] : memref<8x8xf32, #tpu.memory_space<vmem>>, vector<8x8xf32>
    tpu.vector_store %arg7[%c0_71, %c0_72], %129 {strides = array<i32>} : memref<8x8xf32, #tpu.memory_space<vmem>>, vector<8x8xf32>,
    return
  }
  func.func @transform_0(%arg0: i32) -> (i32, i32, i32) {
    %c0_i32 = arith.constant 0 : i32
    %c0_i32_0 = arith.constant 0 : i32
    %c0_i32_1 = arith.constant 0 : i32
    return %c0_i32, %arg0, %c0_i32_0 : i32, i32, i32
  }
  func.func @transform_1(%arg0: i32) -> (i32, i32) {
    %c0_i32 = arith.constant 0 : i32
    %c0_i32_0 = arith.constant 0 : i32
    %c0_i32_1 = arith.constant 0 : i32
    return %c0_i32, %c0_i32_0 : i32, i32
  }
  func.func @transform_2(%arg0: i32) -> (i32, i32) {
    %c0_i32 = arith.constant 0 : i32
    %c0_i32_0 = arith.constant 0 : i32
    %c0_i32_1 = arith.constant 0 : i32
    return %c0_i32, %c0_i32_0 : i32, i32
  }
  func.func @transform_3(%arg0: i32) -> (i32, i32) {
    %c0_i32 = arith.constant 0 : i32
    %c0_i32_0 = arith.constant 0 : i32
    %c0_i32_1 = arith.constant 0 : i32
    return %c0_i32, %c0_i32_0 : i32, i32
  }
  func.func @transform_4(%arg0: i32) -> (i32, i32) {
    %c0_i32 = arith.constant 0 : i32
    %c0_i32_0 = arith.constant 0 : i32
    %c0_i32_1 = arith.constant 0 : i32
    return %c0_i32, %c0_i32_0 : i32, i32
  }
  func.func @transform_5(%arg0: i32) -> (i32, i32) {
    %c0_i32 = arith.constant 0 : i32
    %c0_i32_0 = arith.constant 0 : i32
    %c0_i32_1 = arith.constant 0 : i32
    return %c0_i32, %c0_i32_0 : i32, i32
  }
  func.func @transform_6(%arg0: i32) -> (i32, i32) {
    %c0_i32 = arith.constant 0 : i32
    %c0_i32_0 = arith.constant 0 : i32
    return %c0_i32, %arg0 : i32, i32
  }
}

</mosaic_0001>

<llo_original>
// kernel: tpu_custom_call.1
$region0: #{tpu_custom_call.1}
  #allocation0 [shape = 'u32[]', space=smem, size = 0x4, offset = 0x4, fixed_abs, tag = 'smem constant byte address 0x4 - core index']
  #allocation1 [shape = 'u32[72,128]{1,0:T(1,128)}', space=vmem, size = 0x9000, scoped, tag = 'internal scratch']
  #allocation2 [shape = 'f32[8,8,128]{2,1,0:T(8,128)}', space=vmem, size = 0x8000, scoped, tag = 'scratch operand']
  #allocation3 [shape = 'f32[1,1]{1,0:T(1,128)S(1)}', space=vmem, size = 0x200, scoped, tag = 'scoped memory for tpu_custom_call.1']
  %s0 = inlined_call_operand.hbm [shape: f32[8,8,128], index: 0, kind: input, shape index: {}]
  %s1 = inlined_call_operand.hbm [shape: f32[128,128], index: 1, kind: input, shape index: {}]
  %s2 = inlined_call_operand.hbm [shape: f32[128,128], index: 2, kind: input, shape index: {}]
  %s3 = inlined_call_operand.vmem [shape: f32[1,128], index: 3, kind: input, shape index: {}]
  %s4 = inlined_call_operand.vmem [shape: f32[1,128], index: 4, kind: input, shape index: {}]
  %s5 = inlined_call_operand.<no memory space> [shape: f32[1,1], index: 5, kind: input, shape index: {}]
  %s6 = inlined_call_operand.hbm [shape: f32[8,8], index: 6, kind: output, shape index: {}]
  %s7 = sld [smem:[#allocation0]]
  $region46: #{tpu_custom_call.1} parent=0
    _
  %s9 = ssub.s32 1, %s7
  %s10 = scalar_select 0, %s9, %s7
  %v11 = vstv %s5
  %12 = vst [vmem:[#allocation3] sm:$0x1] %v11
  $region1: #{tpu_custom_call.1} parent=0
    #allocation4 [shape = 'u8[32768]{0}', space=vmem, size = 0x8000, scoped, tag = 'input window, operand 0, single buffered']
    #allocation5 [shape = 's32[1]{0}', space=sflag, size = 0x4, scoped, tag = 'scoped memory for tpu_custom_call.1']
    #allocation6 [shape = 's32[1]{0}', space=sflag, size = 0x4, scoped, tag = 'scoped memory for tpu_custom_call.1']
    #allocation7 [shape = 'u8[65536]{0}', space=vmem, size = 0x10000, scoped, tag = 'input window, operand 1, single buffered']
    #allocation8 [shape = 's32[1]{0}', space=sflag, size = 0x4, scoped, tag = 'scoped memory for tpu_custom_call.1']
    #allocation9 [shape = 'u8[65536]{0}', space=vmem, size = 0x10000, scoped, tag = 'input window, operand 2, single buffered']
    #allocation10 [shape = 'u8[4096]{0}', space=vmem, size = 0x1000, scoped, tag = 'output window, operand 0, single buffered']
    %13 = vsyncpa [#allocation5], 0
    %14 = vsyncpa [#allocation8], 0
    %15 = vsyncpa [#allocation6], 0
    // Predicated region
    $region2: #{tpu_custom_call.1} parent=1 // pred_check
      _
    $region3: #{tpu_custom_call.1} parent=1 // pred_check_branch
      %17 = sbr.rel (0) target = $region5
    $region4: #{tpu_custom_call.1} parent=1 // pred_region
      %19 = vsyncadd [#allocation5], 0
      %s20 = sshll.u32 %s0, 4
      %s21 = int_to_ptr.hbm [resolvable:$true] %s20
      %s22 = sshll.u32 [#allocation4], 4
      %s23 = int_to_ptr.vmem [resolvable:$true] %s22
      %28 = dma.hbm_to_vmem [thread:$0]  %s21, 1024, %s23, [#allocation5], 128, 128, 8
    $region5: #{tpu_custom_call.1} parent=1 // pred_fallthru
      _
    // Predicated region
    $region6: #{tpu_custom_call.1} parent=1 // pred_check
      _
    $region7: #{tpu_custom_call.1} parent=1 // pred_check_branch
      %30 = sbr.rel (0) target = $region9
    $region8: #{tpu_custom_call.1} parent=1 // pred_region
      %32 = vsyncadd [#allocation8], 0
      %s33 = sshll.u32 %s1, 4
      %s34 = int_to_ptr.hbm [resolvable:$true] %s33
      %s35 = sshll.u32 [#allocation7], 4
      %s36 = int_to_ptr.vmem [resolvable:$true] %s35
      %41 = dma.hbm_to_vmem [thread:$0]  %s34, 2048, %s36, [#allocation8], 128, 128, 8
    $region9: #{tpu_custom_call.1} parent=1 // pred_fallthru
      _
    // Predicated region
    $region10: #{tpu_custom_call.1} parent=1 // pred_check
      _
    $region11: #{tpu_custom_call.1} parent=1 // pred_check_branch
      %43 = sbr.rel (0) target = $region13
    $region12: #{tpu_custom_call.1} parent=1 // pred_region
      %45 = vsyncadd [#allocation8], 0
      %s46 = sshll.u32 %s2, 4
      %s47 = int_to_ptr.hbm [resolvable:$true] %s46
      %s48 = sshll.u32 [#allocation9], 4
      %s49 = int_to_ptr.vmem [resolvable:$true] %s48
      %54 = dma.hbm_to_vmem [thread:$0]  %s47, 2048, %s49, [#allocation8], 128, 128, 8
    $region13: #{tpu_custom_call.1} parent=1 // pred_fallthru
      _
    // Predicated region
    $region14: #{tpu_custom_call.1} parent=1 // pred_check
      _
    $region15: #{tpu_custom_call.1} parent=1 // pred_check_branch
      %56 = sbr.rel (0) target = $region17
    $region16: #{tpu_custom_call.1} parent=1 // pred_region
      _
    $region17: #{tpu_custom_call.1} parent=1 // pred_fallthru
      _
    // Predicated region
    $region18: #{tpu_custom_call.1} parent=1 // pred_check
      _
    $region19: #{tpu_custom_call.1} parent=1 // pred_check_branch
      %58 = sbr.rel (0) target = $region21
    $region20: #{tpu_custom_call.1} parent=1 // pred_region
      _
    $region21: #{tpu_custom_call.1} parent=1 // pred_fallthru
      _
    // Predicated region
    $region22: #{tpu_custom_call.1} parent=1 // pred_check
      _
    $region23: #{tpu_custom_call.1} parent=1 // pred_check_branch
      %60 = sbr.rel (0) target = $region25
    $region24: #{tpu_custom_call.1} parent=1 // pred_region
      _
    $region25: #{tpu_custom_call.1} parent=1 // pred_fallthru
      _
    // Predicated region
    $region26: #{tpu_custom_call.1} parent=1 // pred_check
      _
    $region27: #{tpu_custom_call.1} parent=1 // pred_check_branch
      %62 = sbr.rel (0) target = $region29
    $region28: #{tpu_custom_call.1} parent=1 // pred_region
      %64 = dma.done [#allocation5], 1024
    $region29: #{tpu_custom_call.1} parent=1 // pred_fallthru
      _
    // Predicated region
    $region30: #{tpu_custom_call.1} parent=1 // pred_check
      _
    $region31: #{tpu_custom_call.1} parent=1 // pred_check_branch
      %66 = sbr.rel (0) target = $region33
    $region32: #{tpu_custom_call.1} parent=1 // pred_region
      %68 = dma.done [#allocation8], 2048
    $region33: #{tpu_custom_call.1} parent=1 // pred_fallthru
      _
    // Predicated region
    $region34: #{tpu_custom_call.1} parent=1 // pred_check
      _
    $region35: #{tpu_custom_call.1} parent=1 // pred_check_branch
      %70 = sbr.rel (0) target = $region37
    $region36: #{tpu_custom_call.1} parent=1 // pred_region
      %72 = dma.done [#allocation8], 2048
    $region37: #{tpu_custom_call.1} parent=1 // pred_fallthru
      _
    %v73 = vld [vmem:[#allocation7] sm:$0xff]
    %v74 = vld [vmem:[#allocation7 + $0x8] sm:$0xff]
    %v75 = vld [vmem:[#allocation7 + $0x10] sm:$0xff]
    %v76 = vld [vmem:[#allocation7 + $0x18] sm:$0xff]
    %v77 = vld [vmem:[#allocation7 + $0x20] sm:$0xff]
    %v78 = vld [vmem:[#allocation7 + $0x28] sm:$0xff]
    %v79 = vld [vmem:[#allocation7 + $0x30] sm:$0xff]
    %v80 = vld [vmem:[#allocation7 + $0x38] sm:$0xff]
    %v81 = vld [vmem:[#allocation7 + $0x40] sm:$0xff]
    %v82 = vld [vmem:[#allocation7 + $0x48] sm:$0xff]
    %v83 = vld [vmem:[#allocation7 + $0x50] sm:$0xff]
    %v84 = vld [vmem:[#allocation7 + $0x58] sm:$0xff]
    %v85 = vld [vmem:[#allocation7 + $0x60] sm:$0xff]
    %v86 = vld [vmem:[#allocation7 + $0x68] sm:$0xff]
    %v87 = vld [vmem:[#allocation7 + $0x70] sm:$0xff]
    %v88 = vld [vmem:[#allocation7 + $0x78] sm:$0xff]
    %v89 = vld [vmem:[#allocation4] sm:$0xff]
    %90 = vmatpush.msra.mxu0 %v88
    %91 = vmatpush.msra.mxu0 %v87
    %92 = vmatpush.msra.mxu0 %v86
    %93 = vmatpush.msra.mxu0 %v85
    %94 = vmatpush.msra.mxu0 %v84
    %95 = vmatpush.msra.mxu0 %v83
    %96 = vmatpush.msra.mxu0 %v82
    %97 = vmatpush.msra.mxu0 %v81
    %98 = vmatpush.msra.mxu0 %v80
    %99 = vmatpush.msra.mxu0 %v79
    %100 = vmatpush.msra.mxu0 %v78
    %101 = vmatpush.msra.mxu0 %v77
    %102 = vmatpush.msra.mxu0 %v76
    %103 = vmatpush.msra.mxu0 %v75
    %104 = vmatpush.msra.mxu0 %v74
    %105 = vmatpush.msra.mxu0 %v73
    %106 = vmatmul.f32.gmra.mxu0 0.0
    %v107 = vpop.f32.mrf.mxu0
    %v108 = vadd.f32 0.0, %v107
    %109 = vdwg.mxu0
    %v110 = vadd.f32 %v89, %v108
    %v111 = vtanh.pop %v110
    %s112 = scalar_lea.vmem [#allocation4], 8
    %v113 = vld [vmem:[%s112] sm:$0xff]
    %114 = vmatpush.msra.mxu0 %v88
    %115 = vmatpush.msra.mxu0 %v87
    %116 = vmatpush.msra.mxu0 %v86
    %117 = vmatpush.msra.mxu0 %v85
    %118 = vmatpush.msra.mxu0 %v84
    %119 = vmatpush.msra.mxu0 %v83
    %120 = vmatpush.msra.mxu0 %v82
    %121 = vmatpush.msra.mxu0 %v81
    %122 = vmatpush.msra.mxu0 %v80
    %123 = vmatpush.msra.mxu0 %v79
    %124 = vmatpush.msra.mxu0 %v78
    %125 = vmatpush.msra.mxu0 %v77
    %126 = vmatpush.msra.mxu0 %v76
    %127 = vmatpush.msra.mxu0 %v75
    %128 = vmatpush.msra.mxu0 %v74
    %129 = vmatpush.msra.mxu0 %v73
    %130 = vmatmul.f32.gmra.mxu0 %v111
    %v131 = vpop.f32.mrf.mxu0
    %v132 = vadd.f32 0.0, %v131
    %133 = vdwg.mxu0
    %v134 = vadd.f32 %v113, %v132
    %v135 = vtanh.pop %v134
    %s136 = scalar_lea.vmem [#allocation4], 16
    %v137 = vld [vmem:[%s136] sm:$0xff]
    %138 = vmatpush.msra.mxu0 %v88
    %139 = vmatpush.msra.mxu0 %v87
    %140 = vmatpush.msra.mxu0 %v86
    %141 = vmatpush.msra.mxu0 %v85
    %142 = vmatpush.msra.mxu0 %v84
    %143 = vmatpush.msra.mxu0 %v83
    %144 = vmatpush.msra.mxu0 %v82
    %145 = vmatpush.msra.mxu0 %v81
    %146 = vmatpush.msra.mxu0 %v80
    %147 = vmatpush.msra.mxu0 %v79
    %148 = vmatpush.msra.mxu0 %v78
    %149 = vmatpush.msra.mxu0 %v77
    %150 = vmatpush.msra.mxu0 %v76
    %151 = vmatpush.msra.mxu0 %v75
    %152 = vmatpush.msra.mxu0 %v74
    %153 = vmatpush.msra.mxu0 %v73
    %154 = vmatmul.f32.gmra.mxu0 %v135
    %v155 = vpop.f32.mrf.mxu0
    %v156 = vadd.f32 0.0, %v155
    %157 = vdwg.mxu0
    %v158 = vadd.f32 %v137, %v156
    %v159 = vtanh.pop %v158
    %s160 = scalar_lea.vmem [#allocation4], 24
    %v161 = vld [vmem:[%s160] sm:$0xff]
    %162 = vmatpush.msra.mxu0 %v88
    %163 = vmatpush.msra.mxu0 %v87
    %164 = vmatpush.msra.mxu0 %v86
    %165 = vmatpush.msra.mxu0 %v85
    %166 = vmatpush.msra.mxu0 %v84
    %167 = vmatpush.msra.mxu0 %v83
    %168 = vmatpush.msra.mxu0 %v82
    %169 = vmatpush.msra.mxu0 %v81
    %170 = vmatpush.msra.mxu0 %v80
    %171 = vmatpush.msra.mxu0 %v79
    %172 = vmatpush.msra.mxu0 %v78
    %173 = vmatpush.msra.mxu0 %v77
    %174 = vmatpush.msra.mxu0 %v76
    %175 = vmatpush.msra.mxu0 %v75
    %176 = vmatpush.msra.mxu0 %v74
    %177 = vmatpush.msra.mxu0 %v73
    %178 = vmatmul.f32.gmra.mxu0 %v159
    %v179 = vpop.f32.mrf.mxu0
    %v180 = vadd.f32 0.0, %v179
    %181 = vdwg.mxu0
    %v182 = vadd.f32 %v161, %v180
    %v183 = vtanh.pop %v182
    %s184 = scalar_lea.vmem [#allocation4], 32
    %v185 = vld [vmem:[%s184] sm:$0xff]
    %186 = vmatpush.msra.mxu0 %v88
    %187 = vmatpush.msra.mxu0 %v87
    %188 = vmatpush.msra.mxu0 %v86
    %189 = vmatpush.msra.mxu0 %v85
    %190 = vmatpush.msra.mxu0 %v84
    %191 = vmatpush.msra.mxu0 %v83
    %192 = vmatpush.msra.mxu0 %v82
    %193 = vmatpush.msra.mxu0 %v81
    %194 = vmatpush.msra.mxu0 %v80
    %195 = vmatpush.msra.mxu0 %v79
    %196 = vmatpush.msra.mxu0 %v78
    %197 = vmatpush.msra.mxu0 %v77
    %198 = vmatpush.msra.mxu0 %v76
    %199 = vmatpush.msra.mxu0 %v75
    %200 = vmatpush.msra.mxu0 %v74
    %201 = vmatpush.msra.mxu0 %v73
    %202 = vmatmul.f32.gmra.mxu0 %v183
    %v203 = vpop.f32.mrf.mxu0
    %v204 = vadd.f32 0.0, %v203
    %205 = vdwg.mxu0
    %v206 = vadd.f32 %v185, %v204
    %v207 = vtanh.pop %v206
    %s208 = scalar_lea.vmem [#allocation4], 40
    %v209 = vld [vmem:[%s208] sm:$0xff]
    %210 = vmatpush.msra.mxu0 %v88
    %211 = vmatpush.msra.mxu0 %v87
    %212 = vmatpush.msra.mxu0 %v86
    %213 = vmatpush.msra.mxu0 %v85
    %214 = vmatpush.msra.mxu0 %v84
    %215 = vmatpush.msra.mxu0 %v83
    %216 = vmatpush.msra.mxu0 %v82
    %217 = vmatpush.msra.mxu0 %v81
    %218 = vmatpush.msra.mxu0 %v80
    %219 = vmatpush.msra.mxu0 %v79
    %220 = vmatpush.msra.mxu0 %v78
    %221 = vmatpush.msra.mxu0 %v77
    %222 = vmatpush.msra.mxu0 %v76
    %223 = vmatpush.msra.mxu0 %v75
    %224 = vmatpush.msra.mxu0 %v74
    %225 = vmatpush.msra.mxu0 %v73
    %226 = vmatmul.f32.gmra.mxu0 %v207
    %v227 = vpop.f32.mrf.mxu0
    %v228 = vadd.f32 0.0, %v227
    %229 = vdwg.mxu0
    %v230 = vadd.f32 %v209, %v228
    %v231 = vtanh.pop %v230
    %s232 = scalar_lea.vmem [#allocation4], 48
    %v233 = vld [vmem:[%s232] sm:$0xff]
    %234 = vmatpush.msra.mxu0 %v88
    %235 = vmatpush.msra.mxu0 %v87
    %236 = vmatpush.msra.mxu0 %v86
    %237 = vmatpush.msra.mxu0 %v85
    %238 = vmatpush.msra.mxu0 %v84
    %239 = vmatpush.msra.mxu0 %v83
    %240 = vmatpush.msra.mxu0 %v82
    %241 = vmatpush.msra.mxu0 %v81
    %242 = vmatpush.msra.mxu0 %v80
    %243 = vmatpush.msra.mxu0 %v79
    %244 = vmatpush.msra.mxu0 %v78
    %245 = vmatpush.msra.mxu0 %v77
    %246 = vmatpush.msra.mxu0 %v76
    %247 = vmatpush.msra.mxu0 %v75
    %248 = vmatpush.msra.mxu0 %v74
    %249 = vmatpush.msra.mxu0 %v73
    %250 = vmatmul.f32.gmra.mxu0 %v231
    %v251 = vpop.f32.mrf.mxu0
    %v252 = vadd.f32 0.0, %v251
    %253 = vdwg.mxu0
    %v254 = vadd.f32 %v233, %v252
    %v255 = vtanh.pop %v254
    %s256 = scalar_lea.vmem [#allocation4], 56
    %v257 = vld [vmem:[%s256] sm:$0xff]
    %258 = vmatpush.msra.mxu0 %v88
    %259 = vmatpush.msra.mxu0 %v87
    %260 = vmatpush.msra.mxu0 %v86
    %261 = vmatpush.msra.mxu0 %v85
    %262 = vmatpush.msra.mxu0 %v84
    %263 = vmatpush.msra.mxu0 %v83
    %264 = vmatpush.msra.mxu0 %v82
    %265 = vmatpush.msra.mxu0 %v81
    %266 = vmatpush.msra.mxu0 %v80
    %267 = vmatpush.msra.mxu0 %v79
    %268 = vmatpush.msra.mxu0 %v78
    %269 = vmatpush.msra.mxu0 %v77
    %270 = vmatpush.msra.mxu0 %v76
    %271 = vmatpush.msra.mxu0 %v75
    %272 = vmatpush.msra.mxu0 %v74
    %273 = vmatpush.msra.mxu0 %v73
    %274 = vmatmul.f32.gmra.mxu0 %v255
    %v275 = vpop.f32.mrf.mxu0
    %v276 = vadd.f32 0.0, %v275
    %277 = vdwg.mxu0
    %v278 = vadd.f32 %v257, %v276
    %v279 = vtanh.pop %v278
    %v280 = vld [vmem:[%s3] sm:$0x1]
    %v281 = vld [vmem:[#allocation9] sm:$0xff]
    %v282 = vld [vmem:[#allocation9 + $0x8] sm:$0xff]
    %v283 = vld [vmem:[#allocation9 + $0x10] sm:$0xff]
    %v284 = vld [vmem:[#allocation9 + $0x18] sm:$0xff]
    %v285 = vld [vmem:[#allocation9 + $0x20] sm:$0xff]
    %v286 = vld [vmem:[#allocation9 + $0x28] sm:$0xff]
    %v287 = vld [vmem:[#allocation9 + $0x30] sm:$0xff]
    %v288 = vld [vmem:[#allocation9 + $0x38] sm:$0xff]
    %v289 = vld [vmem:[#allocation9 + $0x40] sm:$0xff]
    %v290 = vld [vmem:[#allocation9 + $0x48] sm:$0xff]
    %v291 = vld [vmem:[#allocation9 + $0x50] sm:$0xff]
    %v292 = vld [vmem:[#allocation9 + $0x58] sm:$0xff]
    %v293 = vld [vmem:[#allocation9 + $0x60] sm:$0xff]
    %v294 = vld [vmem:[#allocation9 + $0x68] sm:$0xff]
    %v295 = vld [vmem:[#allocation9 + $0x70] sm:$0xff]
    %v296 = vld [vmem:[#allocation9 + $0x78] sm:$0xff]
    %297 = vmatpush.msra.mxu0 %v296
    %298 = vmatpush.msra.mxu0 %v295
    %299 = vmatpush.msra.mxu0 %v294
    %300 = vmatpush.msra.mxu0 %v293
    %301 = vmatpush.msra.mxu0 %v292
    %302 = vmatpush.msra.mxu0 %v291
    %303 = vmatpush.msra.mxu0 %v290
    %304 = vmatpush.msra.mxu0 %v289
    %305 = vmatpush.msra.mxu0 %v288
    %306 = vmatpush.msra.mxu0 %v287
    %307 = vmatpush.msra.mxu0 %v286
    %308 = vmatpush.msra.mxu0 %v285
    %309 = vmatpush.msra.mxu0 %v284
    %310 = vmatpush.msra.mxu0 %v283
    %311 = vmatpush.msra.mxu0 %v282
    %312 = vmatpush.msra.mxu0 %v281
    %313 = vmatmul.f32.gmra.mxu0 %v279
    %v314 = vpop.f32.mrf.mxu0
    %v315 = vadd.f32 0.0, %v314
    %316 = vdwg.mxu0
    %v318 = vperm.slane %v280, 0
    %v320 = vadd.f32 %v318, %v315
    %v321 = vtanh.pop %v320
    %322 = vst [vmem:[#allocation2] sm:$0xff] %v321
    %323 = vmatpush.msra.mxu0 %v296
    %324 = vmatpush.msra.mxu0 %v295
    %325 = vmatpush.msra.mxu0 %v294
    %326 = vmatpush.msra.mxu0 %v293
    %327 = vmatpush.msra.mxu0 %v292
    %328 = vmatpush.msra.mxu0 %v291
    %329 = vmatpush.msra.mxu0 %v290
    %330 = vmatpush.msra.mxu0 %v289
    %331 = vmatpush.msra.mxu0 %v288
    %332 = vmatpush.msra.mxu0 %v287
    %333 = vmatpush.msra.mxu0 %v286
    %334 = vmatpush.msra.mxu0 %v285
    %335 = vmatpush.msra.mxu0 %v284
    %336 = vmatpush.msra.mxu0 %v283
    %337 = vmatpush.msra.mxu0 %v282
    %338 = vmatpush.msra.mxu0 %v281
    %339 = vmatmul.f32.gmra.mxu0 %v321
    %v340 = vpop.f32.mrf.mxu0
    %v341 = vadd.f32 0.0, %v340
    %342 = vdwg.mxu0
    %v343 = vadd.f32 %v318, %v341
    %v344 = vtanh.pop %v343
    %s345 = scalar_lea.vmem [#allocation2], 8
    %346 = vst [vmem:[%s345] sm:$0xff] %v344
    %347 = vmatpush.msra.mxu0 %v296
    %348 = vmatpush.msra.mxu0 %v295
    %349 = vmatpush.msra.mxu0 %v294
    %350 = vmatpush.msra.mxu0 %v293
    %351 = vmatpush.msra.mxu0 %v292
    %352 = vmatpush.msra.mxu0 %v291
    %353 = vmatpush.msra.mxu0 %v290
    %354 = vmatpush.msra.mxu0 %v289
    %355 = vmatpush.msra.mxu0 %v288
    %356 = vmatpush.msra.mxu0 %v287
    %357 = vmatpush.msra.mxu0 %v286
    %358 = vmatpush.msra.mxu0 %v285
    %359 = vmatpush.msra.mxu0 %v284
    %360 = vmatpush.msra.mxu0 %v283
    %361 = vmatpush.msra.mxu0 %v282
    %362 = vmatpush.msra.mxu0 %v281
    %363 = vmatmul.f32.gmra.mxu0 %v344
    %v364 = vpop.f32.mrf.mxu0
    %v365 = vadd.f32 0.0, %v364
    %366 = vdwg.mxu0
    %v367 = vadd.f32 %v318, %v365
    %v368 = vtanh.pop %v367
    %s369 = scalar_lea.vmem [#allocation2], 16
    %370 = vst [vmem:[%s369] sm:$0xff] %v368
    %371 = vmatpush.msra.mxu0 %v296
    %372 = vmatpush.msra.mxu0 %v295
    %373 = vmatpush.msra.mxu0 %v294
    %374 = vmatpush.msra.mxu0 %v293
    %375 = vmatpush.msra.mxu0 %v292
    %376 = vmatpush.msra.mxu0 %v291
    %377 = vmatpush.msra.mxu0 %v290
    %378 = vmatpush.msra.mxu0 %v289
    %379 = vmatpush.msra.mxu0 %v288
    %380 = vmatpush.msra.mxu0 %v287
    %381 = vmatpush.msra.mxu0 %v286
    %382 = vmatpush.msra.mxu0 %v285
    %383 = vmatpush.msra.mxu0 %v284
    %384 = vmatpush.msra.mxu0 %v283
    %385 = vmatpush.msra.mxu0 %v282
    %386 = vmatpush.msra.mxu0 %v281
    %387 = vmatmul.f32.gmra.mxu0 %v368
    %v388 = vpop.f32.mrf.mxu0
    %v389 = vadd.f32 0.0, %v388
    %390 = vdwg.mxu0
    %v391 = vadd.f32 %v318, %v389
    %v392 = vtanh.pop %v391
    %s393 = scalar_lea.vmem [#allocation2], 24
    %394 = vst [vmem:[%s393] sm:$0xff] %v392
    %395 = vmatpush.msra.mxu0 %v296
    %396 = vmatpush.msra.mxu0 %v295
    %397 = vmatpush.msra.mxu0 %v294
    %398 = vmatpush.msra.mxu0 %v293
    %399 = vmatpush.msra.mxu0 %v292
    %400 = vmatpush.msra.mxu0 %v291
    %401 = vmatpush.msra.mxu0 %v290
    %402 = vmatpush.msra.mxu0 %v289
    %403 = vmatpush.msra.mxu0 %v288
    %404 = vmatpush.msra.mxu0 %v287
    %405 = vmatpush.msra.mxu0 %v286
    %406 = vmatpush.msra.mxu0 %v285
    %407 = vmatpush.msra.mxu0 %v284
    %408 = vmatpush.msra.mxu0 %v283
    %409 = vmatpush.msra.mxu0 %v282
    %410 = vmatpush.msra.mxu0 %v281
    %411 = vmatmul.f32.gmra.mxu0 %v392
    %v412 = vpop.f32.mrf.mxu0
    %v413 = vadd.f32 0.0, %v412
    %414 = vdwg.mxu0
    %v415 = vadd.f32 %v318, %v413
    %v416 = vtanh.pop %v415
    %s417 = scalar_lea.vmem [#allocation2], 32
    %418 = vst [vmem:[%s417] sm:$0xff] %v416
    %419 = vmatpush.msra.mxu0 %v296
    %420 = vmatpush.msra.mxu0 %v295
    %421 = vmatpush.msra.mxu0 %v294
    %422 = vmatpush.msra.mxu0 %v293
    %423 = vmatpush.msra.mxu0 %v292
    %424 = vmatpush.msra.mxu0 %v291
    %425 = vmatpush.msra.mxu0 %v290
    %426 = vmatpush.msra.mxu0 %v289
    %427 = vmatpush.msra.mxu0 %v288
    %428 = vmatpush.msra.mxu0 %v287
    %429 = vmatpush.msra.mxu0 %v286
    %430 = vmatpush.msra.mxu0 %v285
    %431 = vmatpush.msra.mxu0 %v284
    %432 = vmatpush.msra.mxu0 %v283
    %433 = vmatpush.msra.mxu0 %v282
    %434 = vmatpush.msra.mxu0 %v281
    %435 = vmatmul.f32.gmra.mxu0 %v416
    %v436 = vpop.f32.mrf.mxu0
    %v437 = vadd.f32 0.0, %v436
    %438 = vdwg.mxu0
    %v439 = vadd.f32 %v318, %v437
    %v440 = vtanh.pop %v439
    %s441 = scalar_lea.vmem [#allocation2], 40
    %442 = vst [vmem:[%s441] sm:$0xff] %v440
    %443 = vmatpush.msra.mxu0 %v296
    %444 = vmatpush.msra.mxu0 %v295
    %445 = vmatpush.msra.mxu0 %v294
    %446 = vmatpush.msra.mxu0 %v293
    %447 = vmatpush.msra.mxu0 %v292
    %448 = vmatpush.msra.mxu0 %v291
    %449 = vmatpush.msra.mxu0 %v290
    %450 = vmatpush.msra.mxu0 %v289
    %451 = vmatpush.msra.mxu0 %v288
    %452 = vmatpush.msra.mxu0 %v287
    %453 = vmatpush.msra.mxu0 %v286
    %454 = vmatpush.msra.mxu0 %v285
    %455 = vmatpush.msra.mxu0 %v284
    %456 = vmatpush.msra.mxu0 %v283
    %457 = vmatpush.msra.mxu0 %v282
    %458 = vmatpush.msra.mxu0 %v281
    %459 = vmatmul.f32.gmra.mxu0 %v440
    %v460 = vpop.f32.mrf.mxu0
    %v461 = vadd.f32 0.0, %v460
    %462 = vdwg.mxu0
    %v463 = vadd.f32 %v318, %v461
    %v464 = vtanh.pop %v463
    %s465 = scalar_lea.vmem [#allocation2], 48
    %466 = vst [vmem:[%s465] sm:$0xff] %v464
    %467 = vmatpush.msra.mxu0 %v296
    %468 = vmatpush.msra.mxu0 %v295
    %469 = vmatpush.msra.mxu0 %v294
    %470 = vmatpush.msra.mxu0 %v293
    %471 = vmatpush.msra.mxu0 %v292
    %472 = vmatpush.msra.mxu0 %v291
    %473 = vmatpush.msra.mxu0 %v290
    %474 = vmatpush.msra.mxu0 %v289
    %475 = vmatpush.msra.mxu0 %v288
    %476 = vmatpush.msra.mxu0 %v287
    %477 = vmatpush.msra.mxu0 %v286
    %478 = vmatpush.msra.mxu0 %v285
    %479 = vmatpush.msra.mxu0 %v284
    %480 = vmatpush.msra.mxu0 %v283
    %481 = vmatpush.msra.mxu0 %v282
    %482 = vmatpush.msra.mxu0 %v281
    %483 = vmatmul.f32.gmra.mxu0 %v464
    %v484 = vpop.f32.mrf.mxu0
    %v485 = vadd.f32 0.0, %v484
    %486 = vdwg.mxu0
    %v487 = vadd.f32 %v318, %v485
    %v488 = vtanh.pop %v487
    %s489 = scalar_lea.vmem [#allocation2], 56
    %490 = vst [vmem:[%s489] sm:$0xff] %v488
    %v491 = vld [vmem:[#allocation2] sm:$0xff]
    %v492 = vld [vmem:[#allocation2 + $0x8] sm:$0xff]
    %v493 = vld [vmem:[#allocation2 + $0x10] sm:$0xff]
    %v494 = vld [vmem:[#allocation2 + $0x18] sm:$0xff]
    %v495 = vld [vmem:[#allocation2 + $0x20] sm:$0xff]
    %v496 = vld [vmem:[#allocation2 + $0x28] sm:$0xff]
    %v497 = vld [vmem:[#allocation2 + $0x30] sm:$0xff]
    %v498 = vld [vmem:[#allocation2 + $0x38] sm:$0xff]
    %v499 = vld [vmem:[%s4] sm:$0x1]
    %v501 = vperm.slane %v499, 0
    %v503 = vmul.f32 %v491, %v501
    %v504 = vmul.f32 %v492, %v501
    %v505 = vmul.f32 %v493, %v501
    %v506 = vmul.f32 %v494, %v501
    %v507 = vmul.f32 %v495, %v501
    %v508 = vmul.f32 %v496, %v501
    %v509 = vmul.f32 %v497, %v501
    %v510 = vmul.f32 %v498, %v501
    %511 = vadd.xlane.f32.xlu0 %v503
    %v512 = vpop.xlane.xlu0 %511
    %513 = vadd.xlane.f32.xlu0 %v504
    %v514 = vpop.xlane.xlu0 %513
    %515 = vadd.xlane.f32.xlu0 %v505
    %v516 = vpop.xlane.xlu0 %515
    %517 = vadd.xlane.f32.xlu0 %v506
    %v518 = vpop.xlane.xlu0 %517
    %519 = vadd.xlane.f32.xlu0 %v507
    %v520 = vpop.xlane.xlu0 %519
    %521 = vadd.xlane.f32.xlu0 %v508
    %v522 = vpop.xlane.xlu0 %521
    %523 = vadd.xlane.f32.xlu0 %v509
    %v524 = vpop.xlane.xlu0 %523
    %525 = vadd.xlane.f32.xlu0 %v510
    %v526 = vpop.xlane.xlu0 %525
    %v527 = vld [vmem:[#allocation3] sm:$0x1]
    %v529 = vperm.slane %v527, 0
    %530 = vset.pattern.permute.xlu0 0
    %531 = vperm.xlu0 %530, %v529
    %v532 = vpop.permute.xlu0 %531
    %v534 = vadd.f32 %v512, %v532
    %v535 = vadd.f32 %v514, %v532
    %v536 = vadd.f32 %v516, %v532
    %v537 = vadd.f32 %v518, %v532
    %v538 = vadd.f32 %v520, %v532
    %v539 = vadd.f32 %v522, %v532
    %v540 = vadd.f32 %v524, %v532
    %v541 = vadd.f32 %v526, %v532
    %v542 = vxor.u32 %v534, 2147483648
    %v543 = vxor.u32 %v535, 2147483648
    %v544 = vxor.u32 %v536, 2147483648
    %v545 = vxor.u32 %v537, 2147483648
    %v546 = vxor.u32 %v538, 2147483648
    %v547 = vxor.u32 %v539, 2147483648
    %v548 = vxor.u32 %v540, 2147483648
    %v549 = vxor.u32 %v541, 2147483648
    %v550 = vmul.f32 %v542, 1.442695
    %v551 = vpow.pop %v550
    %v552 = vmul.f32 %v543, 1.442695
    %v553 = vpow.pop %v552
    %v554 = vmul.f32 %v544, 1.442695
    %v555 = vpow.pop %v554
    %v556 = vmul.f32 %v545, 1.442695
    %v557 = vpow.pop %v556
    %v558 = vmul.f32 %v546, 1.442695
    %v559 = vpow.pop %v558
    %v560 = vmul.f32 %v547, 1.442695
    %v561 = vpow.pop %v560
    %v562 = vmul.f32 %v548, 1.442695
    %v563 = vpow.pop %v562
    %v564 = vmul.f32 %v549, 1.442695
    %v565 = vpow.pop %v564
    %v566 = vadd.f32 %v551, 1.0
    %v567 = vadd.f32 %v553, 1.0
    %v568 = vadd.f32 %v555, 1.0
    %v569 = vadd.f32 %v557, 1.0
    %v570 = vadd.f32 %v559, 1.0
    %v571 = vadd.f32 %v561, 1.0
    %v572 = vadd.f32 %v563, 1.0
    %v573 = vadd.f32 %v565, 1.0
    %v574 = vrcp.pop %v566
    %v575 = vmul.f32 %v566, %v574
    %v576 = vsub.f32 1.0, %v575
    %v577 = vmul.f32 %v574, %v576
    %v578 = vadd.f32 %v574, %v577
    %vm579 = vweird.f32 %v566
    %vm580 = vweird.f32 %v574
    %vm581 = vmor %vm579, %vm580
    %v582 = vsel %vm581, %v574, %v578
    %v583 = vand.u32 2147483647, %v566
    %vm584 = vcmp.eq.f32.partialorder %v583, 8.507059e+37
    %v585 = vand.u32 %v566, 2147483648
    %v586 = vor.u32 1.1754944e-38, %v585
    %v587 = vsel %vm584, %v586, %v582
    %v588 = vmul.f32 1.0, %v587
    %v589 = vrcp.pop %v567
    %v590 = vmul.f32 %v567, %v589
    %v591 = vsub.f32 1.0, %v590
    %v592 = vmul.f32 %v589, %v591
    %v593 = vadd.f32 %v589, %v592
    %vm594 = vweird.f32 %v567
    %vm595 = vweird.f32 %v589
    %vm596 = vmor %vm594, %vm595
    %v597 = vsel %vm596, %v589, %v593
    %v598 = vand.u32 2147483647, %v567
    %vm599 = vcmp.eq.f32.partialorder %v598, 8.507059e+37
    %v600 = vand.u32 %v567, 2147483648
    %v601 = vor.u32 1.1754944e-38, %v600
    %v602 = vsel %vm599, %v601, %v597
    %v603 = vmul.f32 1.0, %v602
    %v604 = vrcp.pop %v568
    %v605 = vmul.f32 %v568, %v604
    %v606 = vsub.f32 1.0, %v605
    %v607 = vmul.f32 %v604, %v606
    %v608 = vadd.f32 %v604, %v607
    %vm609 = vweird.f32 %v568
    %vm610 = vweird.f32 %v604
    %vm611 = vmor %vm609, %vm610
    %v612 = vsel %vm611, %v604, %v608
    %v613 = vand.u32 2147483647, %v568
    %vm614 = vcmp.eq.f32.partialorder %v613, 8.507059e+37
    %v615 = vand.u32 %v568, 2147483648
    %v616 = vor.u32 1.1754944e-38, %v615
    %v617 = vsel %vm614, %v616, %v612
    %v618 = vmul.f32 1.0, %v617
    %v619 = vrcp.pop %v569
    %v620 = vmul.f32 %v569, %v619
    %v621 = vsub.f32 1.0, %v620
    %v622 = vmul.f32 %v619, %v621
    %v623 = vadd.f32 %v619, %v622
    %vm624 = vweird.f32 %v569
    %vm625 = vweird.f32 %v619
    %vm626 = vmor %vm624, %vm625
    %v627 = vsel %vm626, %v619, %v623
    %v628 = vand.u32 2147483647, %v569
    %vm629 = vcmp.eq.f32.partialorder %v628, 8.507059e+37
    %v630 = vand.u32 %v569, 2147483648
    %v631 = vor.u32 1.1754944e-38, %v630
    %v632 = vsel %vm629, %v631, %v627
    %v633 = vmul.f32 1.0, %v632
    %v634 = vrcp.pop %v570
    %v635 = vmul.f32 %v570, %v634
    %v636 = vsub.f32 1.0, %v635
    %v637 = vmul.f32 %v634, %v636
    %v638 = vadd.f32 %v634, %v637
    %vm639 = vweird.f32 %v570
    %vm640 = vweird.f32 %v634
    %vm641 = vmor %vm639, %vm640
    %v642 = vsel %vm641, %v634, %v638
    %v643 = vand.u32 2147483647, %v570
    %vm644 = vcmp.eq.f32.partialorder %v643, 8.507059e+37
    %v645 = vand.u32 %v570, 2147483648
    %v646 = vor.u32 1.1754944e-38, %v645
    %v647 = vsel %vm644, %v646, %v642
    %v648 = vmul.f32 1.0, %v647
    %v649 = vrcp.pop %v571
    %v650 = vmul.f32 %v571, %v649
    %v651 = vsub.f32 1.0, %v650
    %v652 = vmul.f32 %v649, %v651
    %v653 = vadd.f32 %v649, %v652
    %vm654 = vweird.f32 %v571
    %vm655 = vweird.f32 %v649
    %vm656 = vmor %vm654, %vm655
    %v657 = vsel %vm656, %v649, %v653
    %v658 = vand.u32 2147483647, %v571
    %vm659 = vcmp.eq.f32.partialorder %v658, 8.507059e+37
    %v660 = vand.u32 %v571, 2147483648
    %v661 = vor.u32 1.1754944e-38, %v660
    %v662 = vsel %vm659, %v661, %v657
    %v663 = vmul.f32 1.0, %v662
    %v664 = vrcp.pop %v572
    %v665 = vmul.f32 %v572, %v664
    %v666 = vsub.f32 1.0, %v665
    %v667 = vmul.f32 %v664, %v666
    %v668 = vadd.f32 %v664, %v667
    %vm669 = vweird.f32 %v572
    %vm670 = vweird.f32 %v664
    %vm671 = vmor %vm669, %vm670
    %v672 = vsel %vm671, %v664, %v668
    %v673 = vand.u32 2147483647, %v572
    %vm674 = vcmp.eq.f32.partialorder %v673, 8.507059e+37
    %v675 = vand.u32 %v572, 2147483648
    %v676 = vor.u32 1.1754944e-38, %v675
    %v677 = vsel %vm674, %v676, %v672
    %v678 = vmul.f32 1.0, %v677
    %v679 = vrcp.pop %v573
    %v680 = vmul.f32 %v573, %v679
    %v681 = vsub.f32 1.0, %v680
    %v682 = vmul.f32 %v679, %v681
    %v683 = vadd.f32 %v679, %v682
    %vm684 = vweird.f32 %v573
    %vm685 = vweird.f32 %v679
    %vm686 = vmor %vm684, %vm685
    %v687 = vsel %vm686, %v679, %v683
    %v688 = vand.u32 2147483647, %v573
    %vm689 = vcmp.eq.f32.partialorder %v688, 8.507059e+37
    %v690 = vand.u32 %v573, 2147483648
    %v691 = vor.u32 1.1754944e-38, %v690
    %v692 = vsel %vm689, %v691, %v687
    %v693 = vmul.f32 1.0, %v692
    %v702 = vlaneseq
    %v703 = vand.u32 %v702, 127
    %v704 = vperm.slane %v588, %v703
    %v705 = vperm.slane %v603, %v703
    %v706 = vperm.slane %v618, %v703
    %v707 = vperm.slane %v633, %v703
    %v708 = vperm.slane %v648, %v703
    %v709 = vperm.slane %v663, %v703
    %v710 = vperm.slane %v678, %v703
    %v711 = vperm.slane %v693, %v703
    %vm712 = vcmask 1041409
    %v713 = vsel %vm712, %v705, %v704
    %vm714 = vcmask 1042434
    %v715 = vsel %vm714, %v706, %v713
    %vm716 = vcmask 1043459
    %v717 = vsel %vm716, %v707, %v715
    %vm718 = vcmask 1044484
    %v719 = vsel %vm718, %v708, %v717
    %vm720 = vcmask 1045509
    %v721 = vsel %vm720, %v709, %v719
    %vm722 = vcmask 1046534
    %v723 = vsel %vm722, %v710, %v721
    %vm724 = vcmask 1047559
    %v725 = vsel %vm724, %v711, %v723
    %vm727 = vcmask 64512
    %728 = vst.msk [vmem:[#allocation10] sm:$0xff] %vm727, %v725
    // Predicated region
    $region38: #{tpu_custom_call.1} parent=1 // pred_check
      _
    $region39: #{tpu_custom_call.1} parent=1 // pred_check_branch
      %730 = sbr.rel (0) target = $region41
    $region40: #{tpu_custom_call.1} parent=1 // pred_region
      %732 = vsyncadd [#allocation6], 0
      %s734 = sshll.u32 [#allocation10], 4
      %s735 = int_to_ptr.vmem [resolvable:$true] %s734
      %s736 = sshll.u32 %s6, 4
      %s737 = int_to_ptr.hbm [resolvable:$true] %s736
      %739 = dma.vmem_to_hbm [thread:$0]  %s735, 128, %s737, [#allocation6]
    $region41: #{tpu_custom_call.1} parent=1 // pred_fallthru
      _
    // Predicated region
    $region42: #{tpu_custom_call.1} parent=1 // pred_check
      _
    $region43: #{tpu_custom_call.1} parent=1 // pred_check_branch
      %741 = sbr.rel (0) target = $region45
    $region44: #{tpu_custom_call.1} parent=1 // pred_region
      %743 = dma.done [#allocation6], 128
    $region45: #{tpu_custom_call.1} parent=1 // pred_fallthru
      _
    %744 = vsyncpa [#allocation5], 1
    %745 = vsyncpa [#allocation8], 1
    %746 = vsyncpa [#allocation6], 1

</llo_original>
